<compile_context>
chip_gen: v7x
topology: tpu7x:2x2x1
jax: 0.10.0
libtpu: 0.0.40
codegen_flags: <defaults>
</compile_context>

<pallas_src>
import functools

import jax
import jax.numpy as jnp
from jax.experimental import pallas as pl
from jax.experimental.pallas import tpu as pltpu


def _round_up(x, m):
    return (x + m - 1) // m * m


def _device_kind():
    try:
        return jax.devices()[0].device_kind.lower()
    except Exception:  # pragma: no cover - CPU/interpret fallback
        return ""


def _gen_config():
    """(row_tile, streamed_row_cap, plan_budget, vmem_limit_cap, is_v7)."""
    kind = _device_kind()
    if "v7" in kind:
        # 64 MiB physical VMEM per TensorCore: wide safety margin.
        return 256, 384, 40 << 20, 48 << 20, True
    if "v6" in kind:
        # 128 MiB VMEM, 2x256 MXU: big row tiles, big resident budget.
        return 512, 768, 96 << 20, 110 << 20, False
    if "v5" in kind:
        # 128 MiB VMEM, 4x128 MXU.
        return 256, 256, 96 << 20, 110 << 20, False
    # Unknown device: conservative (v7x-like) budget.
    return 256, 384, 40 << 20, 48 << 20, False


def _plan(N, d_model, d_ff_pad, x_itemsize, w_itemsize):
    """Pick resident-vs-streamed plan, row tile tm and d_FF tile/chunk tf."""
    row_tile, stream_cap, budget, vmem_cap, is_v7 = _gen_config()
    headroom = 2 << 20  # Mosaic internal scratch / alignment slack

    tm = min(row_tile, _round_up(N, 8))
    if is_v7 and N >= 256:
        # 2 TensorCores share the "parallel" row axis: keep >= 2 row tiles.
        tm = min(tm, _round_up((N + 1) // 2, 8))

    weight_bytes = (2 * d_model * d_ff_pad + d_ff_pad + d_model) * w_itemsize

    def act_bytes(tm_, tf_, with_acc):
        b = 2 * tm_ * d_model * x_itemsize      # x tile (double-buffered)
        b += 2 * tm_ * d_model * x_itemsize     # out tile (double-buffered)
        b += tm_ * tf_ * (4 + w_itemsize)       # h: f32 + matmul-dtype copy
        if with_acc:
            b += tm_ * d_model * 4              # f32 accumulator scratch
        return b

    # --- Resident plan: whole padded weights in VMEM (single-buffered). ---
    tf_cands = [c for c in (d_ff_pad, 2048, 1024, 512, 256, 128)
                if c <= d_ff_pad and d_ff_pad % c == 0]
    max_h_bytes = (2 << 20) if is_v7 else (8 << 20)   # bound the h temporaries
    for tm_try in dict.fromkeys(
            (tm, max(8, _round_up(tm // 2, 8)), max(8, _round_up(tm // 4, 8)))):
        tf_res = tf_cands[-1]
        for c in tf_cands:                              # largest chunk first
            if tm_try * c * (4 + w_itemsize) <= max_h_bytes:
                tf_res = c
                break
        n_chunks = d_ff_pad // tf_res
        total = weight_bytes + act_bytes(tm_try, tf_res, n_chunks > 1) + headroom
        if total <= budget:
            return dict(resident=True, tm=tm_try, tf=tf_res, n_chunks=n_chunks,
                        vmem_limit=int(min(vmem_cap,
                                           max(32 << 20, total + (6 << 20)))))

    # --- Streamed plan: d_FF on the grid; weight slices re-read per row tile,
    #     so maximize tm first (arithmetic intensity ~ tm), then tf. ---
    def stream_bytes(tm_, tf_):
        b = act_bytes(tm_, tf_, True)
        b += 2 * (2 * d_model * tf_ + tf_) * w_itemsize  # W1^T/W2^T/b1 slices x2
        b += d_model * w_itemsize                        # b2 (constant)
        return b + headroom

    tm_cap = min(max(stream_cap, tm), _round_up(N, 8))
    tm_cands = sorted({t for t in (1024, 768, 640, 512, 384, 320, 256, 192, 128,
                                   tm_cap) if 0 < t <= tm_cap}, reverse=True)
    tf_cands_s = [c for c in (2048, 1024, 512, 256, 128)
                  if c <= d_ff_pad and d_ff_pad % c == 0]
    for tm_s in tm_cands:
        for tf_s in tf_cands_s:
            if stream_bytes(tm_s, tf_s) <= budget:
                return dict(resident=False, tm=tm_s, tf=tf_s,
                            n_chunks=d_ff_pad // tf_s,
                            vmem_limit=int(min(vmem_cap,
                                               max(32 << 20,
                                                   stream_bytes(tm_s, tf_s)
                                                   + (6 << 20)))))
    # Fallback: smallest tiles.
    tm_s = min(128, _round_up(N, 8))
    tf_s = tf_cands_s[-1]
    return dict(resident=False, tm=tm_s, tf=tf_s, n_chunks=d_ff_pad // tf_s,
                vmem_limit=int(vmem_cap))


# ----------------------------- kernels ------------------------------------ #

def _ffn_resident_simple_kernel(x_ref, w1t_ref, b1_ref, w2t_ref, b2_ref, o_ref):
    # Whole (padded) d_FF in one shot; no accumulator scratch, no init/flush.
    x = x_ref[...].astype(w1t_ref.dtype)
    h = jnp.dot(x, w1t_ref[...], preferred_element_type=jnp.float32)
    h = h + b1_ref[...].astype(jnp.float32)
    h = h * jax.nn.sigmoid(h)                 # SwiGLU (dim-preserving SiLU, EUP)
    # dropout: identity (eval mode)
    out = jnp.dot(h.astype(w2t_ref.dtype), w2t_ref[...],
                  preferred_element_type=jnp.float32)
    o_ref[...] = (out + b2_ref[...].astype(jnp.float32)).astype(o_ref.dtype)


def _ffn_resident_chunked_kernel(tf, n_chunks,
                                 x_ref, w1t_ref, b1_ref, w2t_ref, b2_ref,
                                 o_ref, acc_ref):
    # Weights resident in VMEM; d_FF walked in `tf`-column chunks inside the
    # kernel so (tm, tf) h temporaries stay small.  b2 folded into acc init.
    acc_ref[...] = jnp.broadcast_to(b2_ref[...].astype(jnp.float32),
                                    acc_ref.shape)
    x = x_ref[...].astype(w1t_ref.dtype)

    def body(c, carry):
        off = pl.multiple_of(c * tf, tf)
        h = jnp.dot(x, w1t_ref[:, pl.ds(off, tf)],
                    preferred_element_type=jnp.float32)
        h = h + b1_ref[:, pl.ds(off, tf)].astype(jnp.float32)
        h = h * jax.nn.sigmoid(h)
        acc_ref[...] += jnp.dot(h.astype(w2t_ref.dtype),
                                w2t_ref[pl.ds(off, tf), :],
                                preferred_element_type=jnp.float32)
        return carry

    jax.lax.fori_loop(0, n_chunks, body, 0, unroll=(n_chunks <= 8))
    o_ref[...] = acc_ref[...].astype(o_ref.dtype)


def _ffn_streamed_kernel(x_ref, w1t_ref, b1_ref, w2t_ref, b2_ref, o_ref,
                         acc_ref):
    # grid = (row tiles, d_FF tiles); d_FF is the inner "arbitrary" axis.
    j = pl.program_id(1)

    @pl.when(j == 0)
    def _():
        acc_ref[...] = jnp.broadcast_to(b2_ref[...].astype(jnp.float32),
                                        acc_ref.shape)

    x = x_ref[...].astype(w1t_ref.dtype)
    h = jnp.dot(x, w1t_ref[...], preferred_element_type=jnp.float32)
    h = h + b1_ref[...].astype(jnp.float32)
    h = h * jax.nn.sigmoid(h)
    acc_ref[...] += jnp.dot(h.astype(w2t_ref.dtype), w2t_ref[...],
                            preferred_element_type=jnp.float32)

    @pl.when(j == pl.num_programs(1) - 1)
    def _():
        o_ref[...] = acc_ref[...].astype(o_ref.dtype)


# ----------------------------- wrappers ------------------------------------ #

def prepare_ffn_params(w1, b1, w2, b2, param_dtype=None):
    """One-time parameter prep -- keep OUT of the per-call jitted path.

    Transposes to the row-major x @ W^T layout, reshapes biases to (1, d) rows
    and zero-pads d_FF up to a multiple of 128 lanes (padded columns contribute
    exactly 0: h_pad = 0, silu(0) = 0, 0 @ W2_pad = 0).  Pass
    param_dtype=jnp.bfloat16 to run both matmuls on the fast bf16 MXU path
    (f32 accumulation / bias / SiLU are kept inside the kernel)."""
    d_ff, d_model = w1.shape
    w1t, w2t = w1.T, w2.T                       # (d_model, d_ff), (d_ff, d_model)
    b1_2d, b2_2d = b1.reshape(1, d_ff), b2.reshape(1, d_model)
    if param_dtype is not None:
        w1t, w2t = w1t.astype(param_dtype), w2t.astype(param_dtype)
    d_ff_pad = _round_up(max(d_ff, 128), 128)
    if d_ff_pad != d_ff:
        pad = d_ff_pad - d_ff
        w1t = jnp.pad(w1t, ((0, 0), (0, pad)))
        b1_2d = jnp.pad(b1_2d, ((0, 0), (0, pad)))
        w2t = jnp.pad(w2t, ((0, pad), (0, 0)))
    return w1t, b1_2d, w2t, b2_2d


@jax.jit
def feedforward_pallas(x, w1t, b1, w2t, b2):
    """x: (..., d_model).  Params already prepared by prepare_ffn_params:
       w1t: (d_model, d_ff_pad), b1: (1, d_ff_pad),
       w2t: (d_ff_pad, d_model), b2: (1, d_model)."""
    orig_shape = x.shape
    d_model = x.shape[-1]
    N = x.size // d_model
    x2d = x.reshape(N, d_model)
    d_ff_pad = w1t.shape[1]

    x_itemsize = jnp.dtype(x.dtype).itemsize
    w_itemsize = jnp.dtype(w1t.dtype).itemsize
    plan = _plan(N, d_model, d_ff_pad, x_itemsize, w_itemsize)
    tm, tf = plan["tm"], plan["tf"]
    n_rows = pl.cdiv(N, tm)      # ragged N: clipped last row block, masked store

    weight_bytes = (2 * d_model * d_ff_pad + d_ff_pad + d_model) * w_itemsize
    n_weight_reads = 1 if plan["resident"] else n_rows
    cost = pl.CostEstimate(
        flops=int(4 * N * d_model * d_ff_pad),
        transcendentals=int(N * d_ff_pad),
        bytes_accessed=int(2 * N * d_model * x_itemsize
                           + n_weight_reads * weight_bytes),
    )
    compiler_params = pltpu.CompilerParams(
        dimension_semantics=(("parallel",) if plan["resident"]
                             else ("parallel", "arbitrary")),
        vmem_limit_bytes=int(plan["vmem_limit"]),
    )

    if plan["resident"]:
        const = pl.Buffered(1)   # constant block index -> single-buffer weights
        in_specs = [
            pl.BlockSpec((tm, d_model), lambda i: (i, 0)),                # x
            pl.BlockSpec((d_model, d_ff_pad), lambda i: (0, 0),           # W1^T
                         pipeline_mode=const),
            pl.BlockSpec((1, d_ff_pad), lambda i: (0, 0),                 # b1
                         pipeline_mode=const),
            pl.BlockSpec((d_ff_pad, d_model), lambda i: (0, 0),           # W2^T
                         pipeline_mode=const),
            pl.BlockSpec((1, d_model), lambda i: (0, 0),                  # b2
                         pipeline_mode=const),
        ]
        out_spec = pl.BlockSpec((tm, d_model), lambda i: (i, 0))
        if plan["n_chunks"] == 1:
            kernel = _ffn_resident_simple_kernel
            scratch = []
        else:
            kernel = functools.partial(_ffn_resident_chunked_kernel,
                                       tf, plan["n_chunks"])
            scratch = [pltpu.VMEM((tm, d_model), jnp.float32)]
        grid = (n_rows,)
    else:
        in_specs = [
            pl.BlockSpec((tm, d_model), lambda i, j: (i, 0)),             # x
            pl.BlockSpec((d_model, tf), lambda i, j: (0, j)),             # W1^T
            pl.BlockSpec((1, tf), lambda i, j: (0, j)),                   # b1
            pl.BlockSpec((tf, d_model), lambda i, j: (j, 0)),             # W2^T
            pl.BlockSpec((1, d_model), lambda i, j: (0, 0)),              # b2
        ]
        out_spec = pl.BlockSpec((tm, d_model), lambda i, j: (i, 0))
        kernel = _ffn_streamed_kernel
        scratch = [pltpu.VMEM((tm, d_model), jnp.float32)]
        grid = (n_rows, plan["n_chunks"])

    out2d = pl.pallas_call(
        kernel,
        out_shape=jax.ShapeDtypeStruct((N, d_model), x.dtype),
        grid_spec=pltpu.PrefetchScalarGridSpec(
            num_scalar_prefetch=0,
            grid=grid,
            in_specs=in_specs,
            out_specs=out_spec,
            scratch_shapes=scratch,
        ),
        compiler_params=compiler_params,
        cost_estimate=cost,
    )(x2d, w1t, b1, w2t, b2)

    return out2d.reshape(orig_shape)


# ------------------------------- test -------------------------------------- #

def _reference(x, w1, b1, w2, b2):
    h = jnp.einsum("...d,fd->...f", x, w1) + b1
    h = h * jax.nn.sigmoid(h)
    return jnp.einsum("...f,df->...d", h, w2) + b2


def _run_case(key, B, S, d_model, d_ff, tol):
    kx, kw1, kb1, kw2, kb2 = jax.random.split(key, 5)
    lim1 = 1.0 / (d_model ** 0.5)
    lim2 = 1.0 / (d_ff ** 0.5)
    w1 = jax.random.uniform(kw1, (d_ff, d_model), jnp.float32, -lim1, lim1)
    b1 = jax.random.uniform(kb1, (d_ff,), jnp.float32, -lim1, lim1)
    w2 = jax.random.uniform(kw2, (d_model, d_ff), jnp.float32, -lim2, lim2)
    b2 = jax.random.uniform(kb2, (d_model,), jnp.float32, -lim2, lim2)
    x = jax.random.normal(kx, (B, S, d_model), jnp.float32)

    params = prepare_ffn_params(w1, b1, w2, b2)   # once, outside the hot path
    out = jax.block_until_ready(feedforward_pallas(x, *params))
    ref = _reference(x, w1, b1, w2, b2)
    assert out.shape == x.shape
    err = jnp.max(jnp.abs(out - ref))
    assert jnp.allclose(out, ref, atol=tol, rtol=tol), f"mismatch: max err {err}"


if __name__ == "__main__":
    jax.config.update("jax_default_matmul_precision", "highest")
    key = jax.random.PRNGKey(0)
    k1, k2, k3 = jax.random.split(key, 3)

    # Small shapes consistent with the module (d_FF padded 64 -> 128 in prep).
    _run_case(k1, B=2, S=8, d_model=32, d_ff=64, tol=1e-5)
    # Multiple row tiles, lane-aligned d_FF (resident, single-chunk path).
    _run_case(k2, B=2, S=512, d_model=128, d_ff=384, tol=1e-4)
    # Wider d_FF: exercises the resident in-kernel d_FF-chunked path.
    _run_case(k3, B=2, S=512, d_model=256, d_ff=8192, tol=2e-4)

    print("KERNEL_OK")
</pallas_src>

<mosaic_0001>
module attributes {stable_mosaic.version = 11 : i64} {
  func.func @_ffn_resident_simple_kernel(%arg0: i32, %arg1: memref<16x32xf32, #tpu.memory_space<vmem>>, %arg2: memref<32x128xf32, #tpu.memory_space<vmem>>, %arg3: memref<1x128xf32, #tpu.memory_space<vmem>>, %arg4: memref<128x32xf32, #tpu.memory_space<vmem>>, %arg5: memref<1x32xf32, #tpu.memory_space<vmem>>, %arg6: memref<16x32xf32, #tpu.memory_space<vmem>>) attributes {dimension_semantics = [#tpu.dimension_semantics<parallel>], iteration_bounds = array<i64: 1>, scalar_prefetch = 0 : i64, scratch_operands = 0 : i64, tpu.core_type = #tpu.core_type<tc>, window_params = [{transform_indices = @transform_0, window_bounds = array<i64: 16, 32>}, {pipeline_mode = #tpu.pipeline_mode<synchronous>, transform_indices = @transform_1, window_bounds = array<i64: 32, 128>}, {pipeline_mode = #tpu.pipeline_mode<synchronous>, transform_indices = @transform_2, window_bounds = array<i64: 1, 128>}, {pipeline_mode = #tpu.pipeline_mode<synchronous>, transform_indices = @transform_3, window_bounds = array<i64: 128, 32>}, {pipeline_mode = #tpu.pipeline_mode<synchronous>, transform_indices = @transform_4, window_bounds = array<i64: 1, 32>}, {transform_indices = @transform_5, window_bounds = array<i64: 16, 32>}]} {
    %c0 = arith.constant 0 : index
    %c0_0 = arith.constant 0 : index
    %0 = vector.load %arg1[%c0, %c0_0] : memref<16x32xf32, #tpu.memory_space<vmem>>, vector<16x32xf32>
    %c0_1 = arith.constant 0 : index
    %c0_2 = arith.constant 0 : index
    %1 = vector.load %arg2[%c0_1, %c0_2] : memref<32x128xf32, #tpu.memory_space<vmem>>, vector<32x128xf32>
    %cst = arith.constant dense<0.000000e+00> : vector<16x128xf32>
    %2 = tpu.matmul %0, %1, %cst {dimension_numbers = #tpu.dot_dimension_numbers<[1], [0], [0], [1], [0, 0, 1, 1], [], []>, precision = #tpu.contract_precision<fp32>} : vector<16x32xf32>, vector<32x128xf32>, vector<16x128xf32> -> vector<16x128xf32>
    %c0_3 = arith.constant 0 : index
    %c0_4 = arith.constant 0 : index
    %3 = vector.load %arg3[%c0_3, %c0_4] : memref<1x128xf32, #tpu.memory_space<vmem>>, vector<1x128xf32>
    %4 = vector.broadcast %3 : vector<1x128xf32> to vector<16x128xf32>
    %5 = arith.addf %2, %4 : vector<16x128xf32>
    %6 = arith.negf %5 : vector<16x128xf32>
    %7 = math.exp %6 : vector<16x128xf32>
    %cst_5 = arith.constant 1.000000e+00 : f32
    %8 = vector.broadcast %cst_5 : f32 to vector<16x128xf32>
    %9 = arith.addf %8, %7 : vector<16x128xf32>
    %10 = arith.divf %8, %9 : vector<16x128xf32>
    %11 = arith.mulf %5, %10 : vector<16x128xf32>
    %c0_6 = arith.constant 0 : index
    %c0_7 = arith.constant 0 : index
    %12 = vector.load %arg4[%c0_6, %c0_7] : memref<128x32xf32, #tpu.memory_space<vmem>>, vector<128x32xf32>
    %cst_8 = arith.constant dense<0.000000e+00> : vector<16x32xf32>
    %13 = tpu.matmul %11, %12, %cst_8 {dimension_numbers = #tpu.dot_dimension_numbers<[1], [0], [0], [1], [0, 0, 1, 1], [], []>, precision = #tpu.contract_precision<fp32>} : vector<16x128xf32>, vector<128x32xf32>, vector<16x32xf32> -> vector<16x32xf32>
    %c0_9 = arith.constant 0 : index
    %c0_10 = arith.constant 0 : index
    %14 = vector.load %arg5[%c0_9, %c0_10] : memref<1x32xf32, #tpu.memory_space<vmem>>, vector<1x32xf32>
    %15 = vector.broadcast %14 : vector<1x32xf32> to vector<16x32xf32>
    %16 = arith.addf %13, %15 : vector<16x32xf32>
    %c0_11 = arith.constant 0 : index
    %c0_12 = arith.constant 0 : index
    %17 = vector.load %arg6[%c0_11, %c0_12] : memref<16x32xf32, #tpu.memory_space<vmem>>, vector<16x32xf32>
    tpu.vector_store %arg6[%c0_11, %c0_12], %16 {strides = array<i32>} : memref<16x32xf32, #tpu.memory_space<vmem>>, vector<16x32xf32>,
    return
  }
  func.func @transform_0(%arg0: i32) -> (i32, i32) {
    %c0_i32 = arith.constant 0 : i32
    %c0_i32_0 = arith.constant 0 : i32
    return %arg0, %c0_i32 : i32, i32
  }
  func.func @transform_1(%arg0: i32) -> (i32, i32) {
    %c0_i32 = arith.constant 0 : i32
    %c0_i32_0 = arith.constant 0 : i32
    %c0_i32_1 = arith.constant 0 : i32
    return %c0_i32, %c0_i32_0 : i32, i32
  }
  func.func @transform_2(%arg0: i32) -> (i32, i32) {
    %c0_i32 = arith.constant 0 : i32
    %c0_i32_0 = arith.constant 0 : i32
    %c0_i32_1 = arith.constant 0 : i32
    return %c0_i32, %c0_i32_0 : i32, i32
  }
  func.func @transform_3(%arg0: i32) -> (i32, i32) {
    %c0_i32 = arith.constant 0 : i32
    %c0_i32_0 = arith.constant 0 : i32
    %c0_i32_1 = arith.constant 0 : i32
    return %c0_i32, %c0_i32_0 : i32, i32
  }
  func.func @transform_4(%arg0: i32) -> (i32, i32) {
    %c0_i32 = arith.constant 0 : i32
    %c0_i32_0 = arith.constant 0 : i32
    %c0_i32_1 = arith.constant 0 : i32
    return %c0_i32, %c0_i32_0 : i32, i32
  }
  func.func @transform_5(%arg0: i32) -> (i32, i32) {
    %c0_i32 = arith.constant 0 : i32
    %c0_i32_0 = arith.constant 0 : i32
    return %arg0, %c0_i32 : i32, i32
  }
}

</mosaic_0001>

<llo_original>
// kernel: feedforward_pallas.1
$region0: #{feedforward_pallas.1}
  #allocation0 [shape = 'u32[]', space=smem, size = 0x4, offset = 0x4, fixed_abs, tag = 'smem constant byte address 0x4 - core index']
  #allocation1 [shape = 'u32[144,128]{1,0:T(1,128)}', space=vmem, size = 0x12000, scoped, tag = 'internal scratch']
  %s0 = inlined_call_operand.vmem [shape: f32[16,32], index: 0, kind: input, shape index: {}]
  %s1 = inlined_call_operand.vmem [shape: f32[32,128], index: 1, kind: input, shape index: {}]
  %s2 = inlined_call_operand.vmem [shape: f32[1,128], index: 2, kind: input, shape index: {}]
  %s3 = inlined_call_operand.vmem [shape: f32[128,32], index: 3, kind: input, shape index: {}]
  %s4 = inlined_call_operand.vmem [shape: f32[1,32], index: 4, kind: input, shape index: {}]
  %s5 = inlined_call_operand.hbm [shape: f32[16,32], index: 5, kind: output, shape index: {}]
  %s6 = sld [smem:[#allocation0]]
  $region30: #{feedforward_pallas.1} parent=0
    _
  %s8 = ssub.s32 1, %s6
  %s9 = scalar_select 0, %s8, %s6
  $region1: #{feedforward_pallas.1} parent=0
    #allocation2 [shape = 'u8[8192]{0}', space=vmem, size = 0x2000, scoped, tag = 'output window, operand 0, single buffered']
    #allocation3 [shape = 's32[1]{0}', space=sflag, size = 0x4, scoped, tag = 'scoped memory for feedforward_pallas.1']
    %10 = vsyncpa [#allocation3], 0
    // Predicated region
    $region2: #{feedforward_pallas.1} parent=1 // pred_check
      _
    $region3: #{feedforward_pallas.1} parent=1 // pred_check_branch
      %12 = sbr.rel (0) target = $region5
    $region4: #{feedforward_pallas.1} parent=1 // pred_region
      _
    $region5: #{feedforward_pallas.1} parent=1 // pred_fallthru
      _
    // Predicated region
    $region6: #{feedforward_pallas.1} parent=1 // pred_check
      _
    $region7: #{feedforward_pallas.1} parent=1 // pred_check_branch
      %14 = sbr.rel (0) target = $region9
    $region8: #{feedforward_pallas.1} parent=1 // pred_region
      _
    $region9: #{feedforward_pallas.1} parent=1 // pred_fallthru
      _
    // Predicated region
    $region10: #{feedforward_pallas.1} parent=1 // pred_check
      _
    $region11: #{feedforward_pallas.1} parent=1 // pred_check_branch
      %16 = sbr.rel (0) target = $region13
    $region12: #{feedforward_pallas.1} parent=1 // pred_region
      _
    $region13: #{feedforward_pallas.1} parent=1 // pred_fallthru
      _
    // Predicated region
    $region14: #{feedforward_pallas.1} parent=1 // pred_check
      _
    $region15: #{feedforward_pallas.1} parent=1 // pred_check_branch
      %18 = sbr.rel (0) target = $region17
    $region16: #{feedforward_pallas.1} parent=1 // pred_region
      _
    $region17: #{feedforward_pallas.1} parent=1 // pred_fallthru
      _
    // Predicated region
    $region18: #{feedforward_pallas.1} parent=1 // pred_check
      _
    $region19: #{feedforward_pallas.1} parent=1 // pred_check_branch
      %20 = sbr.rel (0) target = $region21
    $region20: #{feedforward_pallas.1} parent=1 // pred_region
      _
    $region21: #{feedforward_pallas.1} parent=1 // pred_fallthru
      _
    %v21 = vld [vmem:[%s0] sm:$0xff]
    %v22 = vld [vmem:[%s0 + $0x8] sm:$0xff]
    %v23 = vld [vmem:[%s1] sm:$0xff]
    %v24 = vld [vmem:[%s1 + $0x8] sm:$0xff]
    %v25 = vld [vmem:[%s1 + $0x10] sm:$0xff]
    %v26 = vld [vmem:[%s1 + $0x18] sm:$0xff]
    %v27 = vld [vmem:[%s2] sm:$0x1]
    %v29 = vlaneseq
    %v30 = vshrl.u32 %v29, 7
    %v31 = vsub.s32 0, %v30
    %v32 = vrot.slane %v27, %v31
    %vm34 = vcmask 261120
    %v36 = vsel %vm34, %v21, 0
    %v39 = vsel %vm34, %v22, 0
    %41 = vmatprep.subr.mxu0 0.0
    %v42 = vand.u32 %v23, 4294901760
    %43 = vmatpush1.msra.mxu0 %v42
    %44 = vmatprep.subr.mxu0 0.0
    %v45 = vand.u32 %v24, 4294901760
    %46 = vmatpush1.msra.mxu0 %v45
    %47 = vmatprep.subr.mxu0 0.0
    %v48 = vand.u32 %v25, 4294901760
    %49 = vmatpush1.msra.mxu0 %v48
    %50 = vmatprep.subr.mxu0 0.0
    %v51 = vand.u32 %v26, 4294901760
    %52 = vmatpush1.msra.mxu0 %v51
    %53 = vmatprep.subr.mxu0 0.0
    %54 = vmatpush1.msra.mxu0 0.0
    %55 = vmatprep.subr.mxu0 0.0
    %56 = vmatpush1.msra.mxu0 0.0
    %57 = vmatprep.subr.mxu0 0.0
    %58 = vmatpush1.msra.mxu0 0.0
    %59 = vmatprep.subr.mxu0 0.0
    %60 = vmatpush1.msra.mxu0 0.0
    %61 = vmatprep.subr.mxu0 0.0
    %62 = vmatpush1.msra.mxu0 0.0
    %63 = vmatprep.subr.mxu0 0.0
    %64 = vmatpush1.msra.mxu0 0.0
    %65 = vmatprep.subr.mxu0 0.0
    %66 = vmatpush1.msra.mxu0 0.0
    %67 = vmatprep.subr.mxu0 0.0
    %68 = vmatpush1.msra.mxu0 0.0
    %69 = vmatprep.subr.mxu0 0.0
    %70 = vmatpush1.msra.mxu0 0.0
    %71 = vmatprep.subr.mxu0 0.0
    %72 = vmatpush1.msra.mxu0 0.0
    %73 = vmatprep.subr.mxu0 0.0
    %74 = vmatpush1.msra.mxu0 0.0
    %75 = vmatprep.subr.mxu0 0.0
    %76 = vmatpush1.msra.mxu0 0.0
    %77 = vmatprep.subr.mxu0 0.0
    %78 = vmatpush1.msra.mxu0 0.0
    %79 = vmatprep.subr.mxu0 0.0
    %80 = vmatpush1.msra.mxu0 0.0
    %81 = vmatprep.subr.mxu0 0.0
    %82 = vmatpush1.msra.mxu0 0.0
    %83 = vmatprep.subr.mxu0 0.0
    %84 = vmatpush1.msra.mxu0 0.0
    %85 = vmatprep.subr.mxu0 0.0
    %86 = vmatpush1.msra.mxu0 0.0
    %87 = vmatprep.subr.mxu0 0.0
    %88 = vmatpush1.msra.mxu0 0.0
    %89 = vmatprep.subr.mxu0 0.0
    %90 = vmatpush1.msra.mxu0 0.0
    %91 = vmatprep.subr.mxu0 0.0
    %92 = vmatpush1.msra.mxu0 0.0
    %93 = vmatprep.subr.mxu0 0.0
    %94 = vmatpush1.msra.mxu0 0.0
    %95 = vmatprep.subr.mxu0 0.0
    %96 = vmatpush1.msra.mxu0 0.0
    %97 = vmatprep.subr.mxu0 0.0
    %98 = vmatpush1.msra.mxu0 0.0
    %99 = vmatprep.subr.mxu0 0.0
    %100 = vmatpush1.msra.mxu0 0.0
    %101 = vmatprep.subr.mxu0 0.0
    %102 = vmatpush1.msra.mxu0 0.0
    %103 = vmatprep.subr.mxu0 0.0
    %104 = vmatpush1.msra.mxu0 0.0
    %105 = vmatprep.subr.mxu0 0.0
    %106 = vmatpush1.msra.mxu0 0.0
    %107 = vmatprep.subr.mxu0 0.0
    %108 = vmatpush1.msra.mxu0 0.0
    %109 = vmatprep.mubr.f32.mxu0 0.0
    %v110 = vand.u32 %v36, 4294901760
    %v111 = vsub.f32 %v36, %v110
    %v112 = vand.u32 %v111, 4294901760
    %v113 = vsub.f32 %v111, %v112
    %v114 = vand.u32 %v113, 4294901760
    %115 = vmatmul.mubr.f32.gmra.mrb[0].mxu0 %v114
    %v116 = vpop.f32.mrb[0].mxu0
    %v117 = vadd.f32 %v32, %v116
    %v118 = vpop.f32.mrb[0].mxu0
    %119 = vmatprep.mubr.f32.mxu0 0.0
    %v120 = vand.u32 %v39, 4294901760
    %v121 = vsub.f32 %v39, %v120
    %v122 = vand.u32 %v121, 4294901760
    %v123 = vsub.f32 %v121, %v122
    %v124 = vand.u32 %v123, 4294901760
    %125 = vmatmul.mubr.f32.gmra.mrb[0].mxu0 %v124
    %v126 = vpop.f32.mrb[0].mxu0
    %v127 = vadd.f32 %v32, %v126
    %v128 = vpop.f32.mrb[0].mxu0
    %129 = vdwg.mxu0
    %130 = vmatprep.subr.mxu0 0.0
    %v131 = vand.u32 %v23, 4294901760
    %v132 = vsub.f32 %v23, %v131
    %v133 = vand.u32 %v132, 4294901760
    %v134 = vsub.f32 %v132, %v133
    %v135 = vand.u32 %v134, 4294901760
    %136 = vmatpush1.msra.mxu0 %v135
    %137 = vmatprep.subr.mxu0 0.0
    %v138 = vand.u32 %v24, 4294901760
    %v139 = vsub.f32 %v24, %v138
    %v140 = vand.u32 %v139, 4294901760
    %v141 = vsub.f32 %v139, %v140
    %v142 = vand.u32 %v141, 4294901760
    %143 = vmatpush1.msra.mxu0 %v142
    %144 = vmatprep.subr.mxu0 0.0
    %v145 = vand.u32 %v25, 4294901760
    %v146 = vsub.f32 %v25, %v145
    %v147 = vand.u32 %v146, 4294901760
    %v148 = vsub.f32 %v146, %v147
    %v149 = vand.u32 %v148, 4294901760
    %150 = vmatpush1.msra.mxu0 %v149
    %151 = vmatprep.subr.mxu0 0.0
    %v152 = vand.u32 %v26, 4294901760
    %v153 = vsub.f32 %v26, %v152
    %v154 = vand.u32 %v153, 4294901760
    %v155 = vsub.f32 %v153, %v154
    %v156 = vand.u32 %v155, 4294901760
    %157 = vmatpush1.msra.mxu0 %v156
    %158 = vmatprep.subr.mxu0 0.0
    %159 = vmatpush1.msra.mxu0 0.0
    %160 = vmatprep.subr.mxu0 0.0
    %161 = vmatpush1.msra.mxu0 0.0
    %162 = vmatprep.subr.mxu0 0.0
    %163 = vmatpush1.msra.mxu0 0.0
    %164 = vmatprep.subr.mxu0 0.0
    %165 = vmatpush1.msra.mxu0 0.0
    %166 = vmatprep.subr.mxu0 0.0
    %167 = vmatpush1.msra.mxu0 0.0
    %168 = vmatprep.subr.mxu0 0.0
    %169 = vmatpush1.msra.mxu0 0.0
    %170 = vmatprep.subr.mxu0 0.0
    %171 = vmatpush1.msra.mxu0 0.0
    %172 = vmatprep.subr.mxu0 0.0
    %173 = vmatpush1.msra.mxu0 0.0
    %174 = vmatprep.subr.mxu0 0.0
    %175 = vmatpush1.msra.mxu0 0.0
    %176 = vmatprep.subr.mxu0 0.0
    %177 = vmatpush1.msra.mxu0 0.0
    %178 = vmatprep.subr.mxu0 0.0
    %179 = vmatpush1.msra.mxu0 0.0
    %180 = vmatprep.subr.mxu0 0.0
    %181 = vmatpush1.msra.mxu0 0.0
    %182 = vmatprep.subr.mxu0 0.0
    %183 = vmatpush1.msra.mxu0 0.0
    %184 = vmatprep.subr.mxu0 0.0
    %185 = vmatpush1.msra.mxu0 0.0
    %186 = vmatprep.subr.mxu0 0.0
    %187 = vmatpush1.msra.mxu0 0.0
    %188 = vmatprep.subr.mxu0 0.0
    %189 = vmatpush1.msra.mxu0 0.0
    %190 = vmatprep.subr.mxu0 0.0
    %191 = vmatpush1.msra.mxu0 0.0
    %192 = vmatprep.subr.mxu0 0.0
    %193 = vmatpush1.msra.mxu0 0.0
    %194 = vmatprep.subr.mxu0 0.0
    %195 = vmatpush1.msra.mxu0 0.0
    %196 = vmatprep.subr.mxu0 0.0
    %197 = vmatpush1.msra.mxu0 0.0
    %198 = vmatprep.subr.mxu0 0.0
    %199 = vmatpush1.msra.mxu0 0.0
    %200 = vmatprep.subr.mxu0 0.0
    %201 = vmatpush1.msra.mxu0 0.0
    %202 = vmatprep.subr.mxu0 0.0
    %203 = vmatpush1.msra.mxu0 0.0
    %204 = vmatprep.subr.mxu0 0.0
    %205 = vmatpush1.msra.mxu0 0.0
    %206 = vmatprep.subr.mxu0 0.0
    %207 = vmatpush1.msra.mxu0 0.0
    %208 = vmatprep.subr.mxu0 0.0
    %209 = vmatpush1.msra.mxu0 0.0
    %210 = vmatprep.subr.mxu0 0.0
    %211 = vmatpush1.msra.mxu0 0.0
    %212 = vmatprep.subr.mxu0 0.0
    %213 = vmatpush1.msra.mxu0 0.0
    %214 = vmatprep.mubr.f32.mxu0 0.0
    %v215 = vand.u32 %v36, 4294901760
    %216 = vmatmul.mubr.f32.gmra.mrb[0].mxu0 %v215
    %v217 = vpop.f32.mrb[0].mxu0
    %v218 = vadd.f32 %v117, %v217
    %v219 = vpop.f32.mrb[0].mxu0
    %220 = vmatprep.mubr.f32.mxu0 0.0
    %v221 = vand.u32 %v39, 4294901760
    %222 = vmatmul.mubr.f32.gmra.mrb[0].mxu0 %v221
    %v223 = vpop.f32.mrb[0].mxu0
    %v224 = vadd.f32 %v127, %v223
    %v225 = vpop.f32.mrb[0].mxu0
    %226 = vdwg.mxu0
    %227 = vmatprep.subr.mxu0 0.0
    %v228 = vand.u32 %v23, 4294901760
    %v229 = vsub.f32 %v23, %v228
    %230 = vmatpush1.msra.mxu0 %v229
    %231 = vmatprep.subr.mxu0 0.0
    %v232 = vand.u32 %v24, 4294901760
    %v233 = vsub.f32 %v24, %v232
    %234 = vmatpush1.msra.mxu0 %v233
    %235 = vmatprep.subr.mxu0 0.0
    %v236 = vand.u32 %v25, 4294901760
    %v237 = vsub.f32 %v25, %v236
    %238 = vmatpush1.msra.mxu0 %v237
    %239 = vmatprep.subr.mxu0 0.0
    %v240 = vand.u32 %v26, 4294901760
    %v241 = vsub.f32 %v26, %v240
    %242 = vmatpush1.msra.mxu0 %v241
    %243 = vmatprep.subr.mxu0 0.0
    %244 = vmatpush1.msra.mxu0 0.0
    %245 = vmatprep.subr.mxu0 0.0
    %246 = vmatpush1.msra.mxu0 0.0
    %247 = vmatprep.subr.mxu0 0.0
    %248 = vmatpush1.msra.mxu0 0.0
    %249 = vmatprep.subr.mxu0 0.0
    %250 = vmatpush1.msra.mxu0 0.0
    %251 = vmatprep.subr.mxu0 0.0
    %252 = vmatpush1.msra.mxu0 0.0
    %253 = vmatprep.subr.mxu0 0.0
    %254 = vmatpush1.msra.mxu0 0.0
    %255 = vmatprep.subr.mxu0 0.0
    %256 = vmatpush1.msra.mxu0 0.0
    %257 = vmatprep.subr.mxu0 0.0
    %258 = vmatpush1.msra.mxu0 0.0
    %259 = vmatprep.subr.mxu0 0.0
    %260 = vmatpush1.msra.mxu0 0.0
    %261 = vmatprep.subr.mxu0 0.0
    %262 = vmatpush1.msra.mxu0 0.0
    %263 = vmatprep.subr.mxu0 0.0
    %264 = vmatpush1.msra.mxu0 0.0
    %265 = vmatprep.subr.mxu0 0.0
    %266 = vmatpush1.msra.mxu0 0.0
    %267 = vmatprep.subr.mxu0 0.0
    %268 = vmatpush1.msra.mxu0 0.0
    %269 = vmatprep.subr.mxu0 0.0
    %270 = vmatpush1.msra.mxu0 0.0
    %271 = vmatprep.subr.mxu0 0.0
    %272 = vmatpush1.msra.mxu0 0.0
    %273 = vmatprep.subr.mxu0 0.0
    %274 = vmatpush1.msra.mxu0 0.0
    %275 = vmatprep.subr.mxu0 0.0
    %276 = vmatpush1.msra.mxu0 0.0
    %277 = vmatprep.subr.mxu0 0.0
    %278 = vmatpush1.msra.mxu0 0.0
    %279 = vmatprep.subr.mxu0 0.0
    %280 = vmatpush1.msra.mxu0 0.0
    %281 = vmatprep.subr.mxu0 0.0
    %282 = vmatpush1.msra.mxu0 0.0
    %283 = vmatprep.subr.mxu0 0.0
    %284 = vmatpush1.msra.mxu0 0.0
    %285 = vmatprep.subr.mxu0 0.0
    %286 = vmatpush1.msra.mxu0 0.0
    %287 = vmatprep.subr.mxu0 0.0
    %288 = vmatpush1.msra.mxu0 0.0
    %289 = vmatprep.subr.mxu0 0.0
    %290 = vmatpush1.msra.mxu0 0.0
    %291 = vmatprep.subr.mxu0 0.0
    %292 = vmatpush1.msra.mxu0 0.0
    %293 = vmatprep.subr.mxu0 0.0
    %294 = vmatpush1.msra.mxu0 0.0
    %295 = vmatprep.subr.mxu0 0.0
    %296 = vmatpush1.msra.mxu0 0.0
    %297 = vmatprep.subr.mxu0 0.0
    %298 = vmatpush1.msra.mxu0 0.0
    %299 = vmatprep.mubr.f32.mxu0 0.0
    %v300 = vand.u32 %v36, 4294901760
    %v301 = vsub.f32 %v36, %v300
    %302 = vmatmul.mubr.f32.gmra.mrb[0].mxu0 %v301
    %v303 = vpop.f32.mrb[0].mxu0
    %v304 = vadd.f32 %v218, %v303
    %v305 = vpop.f32.mrb[0].mxu0
    %306 = vmatprep.mubr.f32.mxu0 0.0
    %v307 = vand.u32 %v39, 4294901760
    %v308 = vsub.f32 %v39, %v307
    %309 = vmatmul.mubr.f32.gmra.mrb[0].mxu0 %v308
    %v310 = vpop.f32.mrb[0].mxu0
    %v311 = vadd.f32 %v224, %v310
    %v312 = vpop.f32.mrb[0].mxu0
    %313 = vdwg.mxu0
    %314 = vmatprep.subr.mxu0 0.0
    %v315 = vand.u32 %v23, 4294901760
    %316 = vmatpush1.msra.mxu0 %v315
    %317 = vmatprep.subr.mxu0 0.0
    %v318 = vand.u32 %v24, 4294901760
    %319 = vmatpush1.msra.mxu0 %v318
    %320 = vmatprep.subr.mxu0 0.0
    %v321 = vand.u32 %v25, 4294901760
    %322 = vmatpush1.msra.mxu0 %v321
    %323 = vmatprep.subr.mxu0 0.0
    %v324 = vand.u32 %v26, 4294901760
    %325 = vmatpush1.msra.mxu0 %v324
    %326 = vmatprep.subr.mxu0 0.0
    %327 = vmatpush1.msra.mxu0 0.0
    %328 = vmatprep.subr.mxu0 0.0
    %329 = vmatpush1.msra.mxu0 0.0
    %330 = vmatprep.subr.mxu0 0.0
    %331 = vmatpush1.msra.mxu0 0.0
    %332 = vmatprep.subr.mxu0 0.0
    %333 = vmatpush1.msra.mxu0 0.0
    %334 = vmatprep.subr.mxu0 0.0
    %335 = vmatpush1.msra.mxu0 0.0
    %336 = vmatprep.subr.mxu0 0.0
    %337 = vmatpush1.msra.mxu0 0.0
    %338 = vmatprep.subr.mxu0 0.0
    %339 = vmatpush1.msra.mxu0 0.0
    %340 = vmatprep.subr.mxu0 0.0
    %341 = vmatpush1.msra.mxu0 0.0
    %342 = vmatprep.subr.mxu0 0.0
    %343 = vmatpush1.msra.mxu0 0.0
    %344 = vmatprep.subr.mxu0 0.0
    %345 = vmatpush1.msra.mxu0 0.0
    %346 = vmatprep.subr.mxu0 0.0
    %347 = vmatpush1.msra.mxu0 0.0
    %348 = vmatprep.subr.mxu0 0.0
    %349 = vmatpush1.msra.mxu0 0.0
    %350 = vmatprep.subr.mxu0 0.0
    %351 = vmatpush1.msra.mxu0 0.0
    %352 = vmatprep.subr.mxu0 0.0
    %353 = vmatpush1.msra.mxu0 0.0
    %354 = vmatprep.subr.mxu0 0.0
    %355 = vmatpush1.msra.mxu0 0.0
    %356 = vmatprep.subr.mxu0 0.0
    %357 = vmatpush1.msra.mxu0 0.0
    %358 = vmatprep.subr.mxu0 0.0
    %359 = vmatpush1.msra.mxu0 0.0
    %360 = vmatprep.subr.mxu0 0.0
    %361 = vmatpush1.msra.mxu0 0.0
    %362 = vmatprep.subr.mxu0 0.0
    %363 = vmatpush1.msra.mxu0 0.0
    %364 = vmatprep.subr.mxu0 0.0
    %365 = vmatpush1.msra.mxu0 0.0
    %366 = vmatprep.subr.mxu0 0.0
    %367 = vmatpush1.msra.mxu0 0.0
    %368 = vmatprep.subr.mxu0 0.0
    %369 = vmatpush1.msra.mxu0 0.0
    %370 = vmatprep.subr.mxu0 0.0
    %371 = vmatpush1.msra.mxu0 0.0
    %372 = vmatprep.subr.mxu0 0.0
    %373 = vmatpush1.msra.mxu0 0.0
    %374 = vmatprep.subr.mxu0 0.0
    %375 = vmatpush1.msra.mxu0 0.0
    %376 = vmatprep.subr.mxu0 0.0
    %377 = vmatpush1.msra.mxu0 0.0
    %378 = vmatprep.subr.mxu0 0.0
    %379 = vmatpush1.msra.mxu0 0.0
    %380 = vmatprep.subr.mxu0 0.0
    %381 = vmatpush1.msra.mxu0 0.0
    %382 = vmatprep.mubr.f32.mxu0 0.0
    %v383 = vand.u32 %v36, 4294901760
    %v384 = vsub.f32 %v36, %v383
    %v385 = vand.u32 %v384, 4294901760
    %386 = vmatmul.mubr.f32.gmra.mrb[0].mxu0 %v385
    %v387 = vpop.f32.mrb[0].mxu0
    %v388 = vadd.f32 %v304, %v387
    %v389 = vpop.f32.mrb[0].mxu0
    %390 = vmatprep.mubr.f32.mxu0 0.0
    %v391 = vand.u32 %v39, 4294901760
    %v392 = vsub.f32 %v39, %v391
    %v393 = vand.u32 %v392, 4294901760
    %394 = vmatmul.mubr.f32.gmra.mrb[0].mxu0 %v393
    %v395 = vpop.f32.mrb[0].mxu0
    %v396 = vadd.f32 %v311, %v395
    %v397 = vpop.f32.mrb[0].mxu0
    %398 = vdwg.mxu0
    %399 = vmatprep.subr.mxu0 0.0
    %v400 = vand.u32 %v23, 4294901760
    %v401 = vsub.f32 %v23, %v400
    %v402 = vand.u32 %v401, 4294901760
    %403 = vmatpush1.msra.mxu0 %v402
    %404 = vmatprep.subr.mxu0 0.0
    %v405 = vand.u32 %v24, 4294901760
    %v406 = vsub.f32 %v24, %v405
    %v407 = vand.u32 %v406, 4294901760
    %408 = vmatpush1.msra.mxu0 %v407
    %409 = vmatprep.subr.mxu0 0.0
    %v410 = vand.u32 %v25, 4294901760
    %v411 = vsub.f32 %v25, %v410
    %v412 = vand.u32 %v411, 4294901760
    %413 = vmatpush1.msra.mxu0 %v412
    %414 = vmatprep.subr.mxu0 0.0
    %v415 = vand.u32 %v26, 4294901760
    %v416 = vsub.f32 %v26, %v415
    %v417 = vand.u32 %v416, 4294901760
    %418 = vmatpush1.msra.mxu0 %v417
    %419 = vmatprep.subr.mxu0 0.0
    %420 = vmatpush1.msra.mxu0 0.0
    %421 = vmatprep.subr.mxu0 0.0
    %422 = vmatpush1.msra.mxu0 0.0
    %423 = vmatprep.subr.mxu0 0.0
    %424 = vmatpush1.msra.mxu0 0.0
    %425 = vmatprep.subr.mxu0 0.0
    %426 = vmatpush1.msra.mxu0 0.0
    %427 = vmatprep.subr.mxu0 0.0
    %428 = vmatpush1.msra.mxu0 0.0
    %429 = vmatprep.subr.mxu0 0.0
    %430 = vmatpush1.msra.mxu0 0.0
    %431 = vmatprep.subr.mxu0 0.0
    %432 = vmatpush1.msra.mxu0 0.0
    %433 = vmatprep.subr.mxu0 0.0
    %434 = vmatpush1.msra.mxu0 0.0
    %435 = vmatprep.subr.mxu0 0.0
    %436 = vmatpush1.msra.mxu0 0.0
    %437 = vmatprep.subr.mxu0 0.0
    %438 = vmatpush1.msra.mxu0 0.0
    %439 = vmatprep.subr.mxu0 0.0
    %440 = vmatpush1.msra.mxu0 0.0
    %441 = vmatprep.subr.mxu0 0.0
    %442 = vmatpush1.msra.mxu0 0.0
    %443 = vmatprep.subr.mxu0 0.0
    %444 = vmatpush1.msra.mxu0 0.0
    %445 = vmatprep.subr.mxu0 0.0
    %446 = vmatpush1.msra.mxu0 0.0
    %447 = vmatprep.subr.mxu0 0.0
    %448 = vmatpush1.msra.mxu0 0.0
    %449 = vmatprep.subr.mxu0 0.0
    %450 = vmatpush1.msra.mxu0 0.0
    %451 = vmatprep.subr.mxu0 0.0
    %452 = vmatpush1.msra.mxu0 0.0
    %453 = vmatprep.subr.mxu0 0.0
    %454 = vmatpush1.msra.mxu0 0.0
    %455 = vmatprep.subr.mxu0 0.0
    %456 = vmatpush1.msra.mxu0 0.0
    %457 = vmatprep.subr.mxu0 0.0
    %458 = vmatpush1.msra.mxu0 0.0
    %459 = vmatprep.subr.mxu0 0.0
    %460 = vmatpush1.msra.mxu0 0.0
    %461 = vmatprep.subr.mxu0 0.0
    %462 = vmatpush1.msra.mxu0 0.0
    %463 = vmatprep.subr.mxu0 0.0
    %464 = vmatpush1.msra.mxu0 0.0
    %465 = vmatprep.subr.mxu0 0.0
    %466 = vmatpush1.msra.mxu0 0.0
    %467 = vmatprep.subr.mxu0 0.0
    %468 = vmatpush1.msra.mxu0 0.0
    %469 = vmatprep.subr.mxu0 0.0
    %470 = vmatpush1.msra.mxu0 0.0
    %471 = vmatprep.subr.mxu0 0.0
    %472 = vmatpush1.msra.mxu0 0.0
    %473 = vmatprep.subr.mxu0 0.0
    %474 = vmatpush1.msra.mxu0 0.0
    %475 = vmatprep.mubr.f32.mxu0 0.0
    %v476 = vand.u32 %v36, 4294901760
    %477 = vmatmul.mubr.f32.gmra.mrb[0].mxu0 %v476
    %v478 = vpop.f32.mrb[0].mxu0
    %v479 = vadd.f32 %v388, %v478
    %v480 = vpop.f32.mrb[0].mxu0
    %481 = vmatprep.mubr.f32.mxu0 0.0
    %v482 = vand.u32 %v39, 4294901760
    %483 = vmatmul.mubr.f32.gmra.mrb[0].mxu0 %v482
    %v484 = vpop.f32.mrb[0].mxu0
    %v485 = vadd.f32 %v396, %v484
    %v486 = vpop.f32.mrb[0].mxu0
    %487 = vdwg.mxu0
    %488 = vmatprep.subr.mxu0 0.0
    %v489 = vand.u32 %v23, 4294901760
    %490 = vmatpush1.msra.mxu0 %v489
    %491 = vmatprep.subr.mxu0 0.0
    %v492 = vand.u32 %v24, 4294901760
    %493 = vmatpush1.msra.mxu0 %v492
    %494 = vmatprep.subr.mxu0 0.0
    %v495 = vand.u32 %v25, 4294901760
    %496 = vmatpush1.msra.mxu0 %v495
    %497 = vmatprep.subr.mxu0 0.0
    %v498 = vand.u32 %v26, 4294901760
    %499 = vmatpush1.msra.mxu0 %v498
    %500 = vmatprep.subr.mxu0 0.0
    %501 = vmatpush1.msra.mxu0 0.0
    %502 = vmatprep.subr.mxu0 0.0
    %503 = vmatpush1.msra.mxu0 0.0
    %504 = vmatprep.subr.mxu0 0.0
    %505 = vmatpush1.msra.mxu0 0.0
    %506 = vmatprep.subr.mxu0 0.0
    %507 = vmatpush1.msra.mxu0 0.0
    %508 = vmatprep.subr.mxu0 0.0
    %509 = vmatpush1.msra.mxu0 0.0
    %510 = vmatprep.subr.mxu0 0.0
    %511 = vmatpush1.msra.mxu0 0.0
    %512 = vmatprep.subr.mxu0 0.0
    %513 = vmatpush1.msra.mxu0 0.0
    %514 = vmatprep.subr.mxu0 0.0
    %515 = vmatpush1.msra.mxu0 0.0
    %516 = vmatprep.subr.mxu0 0.0
    %517 = vmatpush1.msra.mxu0 0.0
    %518 = vmatprep.subr.mxu0 0.0
    %519 = vmatpush1.msra.mxu0 0.0
    %520 = vmatprep.subr.mxu0 0.0
    %521 = vmatpush1.msra.mxu0 0.0
    %522 = vmatprep.subr.mxu0 0.0
    %523 = vmatpush1.msra.mxu0 0.0
    %524 = vmatprep.subr.mxu0 0.0
    %525 = vmatpush1.msra.mxu0 0.0
    %526 = vmatprep.subr.mxu0 0.0
    %527 = vmatpush1.msra.mxu0 0.0
    %528 = vmatprep.subr.mxu0 0.0
    %529 = vmatpush1.msra.mxu0 0.0
    %530 = vmatprep.subr.mxu0 0.0
    %531 = vmatpush1.msra.mxu0 0.0
    %532 = vmatprep.subr.mxu0 0.0
    %533 = vmatpush1.msra.mxu0 0.0
    %534 = vmatprep.subr.mxu0 0.0
    %535 = vmatpush1.msra.mxu0 0.0
    %536 = vmatprep.subr.mxu0 0.0
    %537 = vmatpush1.msra.mxu0 0.0
    %538 = vmatprep.subr.mxu0 0.0
    %539 = vmatpush1.msra.mxu0 0.0
    %540 = vmatprep.subr.mxu0 0.0
    %541 = vmatpush1.msra.mxu0 0.0
    %542 = vmatprep.subr.mxu0 0.0
    %543 = vmatpush1.msra.mxu0 0.0
    %544 = vmatprep.subr.mxu0 0.0
    %545 = vmatpush1.msra.mxu0 0.0
    %546 = vmatprep.subr.mxu0 0.0
    %547 = vmatpush1.msra.mxu0 0.0
    %548 = vmatprep.subr.mxu0 0.0
    %549 = vmatpush1.msra.mxu0 0.0
    %550 = vmatprep.subr.mxu0 0.0
    %551 = vmatpush1.msra.mxu0 0.0
    %552 = vmatprep.subr.mxu0 0.0
    %553 = vmatpush1.msra.mxu0 0.0
    %554 = vmatprep.subr.mxu0 0.0
    %555 = vmatpush1.msra.mxu0 0.0
    %556 = vmatprep.mubr.f32.mxu0 0.0
    %v557 = vand.u32 %v36, 4294901760
    %558 = vmatmul.mubr.f32.gmra.mrb[0].mxu0 %v557
    %v559 = vpop.f32.mrb[0].mxu0
    %v560 = vadd.f32 %v479, %v559
    %v561 = vpop.f32.mrb[0].mxu0
    %562 = vmatprep.mubr.f32.mxu0 0.0
    %v563 = vand.u32 %v39, 4294901760
    %564 = vmatmul.mubr.f32.gmra.mrb[0].mxu0 %v563
    %v565 = vpop.f32.mrb[0].mxu0
    %v566 = vadd.f32 %v485, %v565
    %v567 = vpop.f32.mrb[0].mxu0
    %568 = vdwg.mxu0
    %v569 = vxor.u32 %v560, 2147483648
    %v570 = vxor.u32 %v566, 2147483648
    %v571 = vmul.f32 %v569, 1.442695
    %v572 = vpow.pop %v571
    %v573 = vmul.f32 %v570, 1.442695
    %v574 = vpow.pop %v573
    %v575 = vadd.f32 %v572, 1.0
    %v576 = vadd.f32 %v574, 1.0
    %v577 = vrcp.pop %v575
    %v578 = vmul.f32 1.0, %v577
    %v579 = vrcp.pop %v576
    %v580 = vmul.f32 1.0, %v579
    %v581 = vmul.f32 %v560, %v578
    %v582 = vmul.f32 %v566, %v580
    %v583 = vld [vmem:[%s3] sm:$0xff]
    %v584 = vld [vmem:[%s3 + $0x8] sm:$0xff]
    %v585 = vld [vmem:[%s3 + $0x10] sm:$0xff]
    %v586 = vld [vmem:[%s3 + $0x18] sm:$0xff]
    %v587 = vld [vmem:[%s3 + $0x20] sm:$0xff]
    %v588 = vld [vmem:[%s3 + $0x28] sm:$0xff]
    %v589 = vld [vmem:[%s3 + $0x30] sm:$0xff]
    %v590 = vld [vmem:[%s3 + $0x38] sm:$0xff]
    %v591 = vld [vmem:[%s3 + $0x40] sm:$0xff]
    %v592 = vld [vmem:[%s3 + $0x48] sm:$0xff]
    %v593 = vld [vmem:[%s3 + $0x50] sm:$0xff]
    %v594 = vld [vmem:[%s3 + $0x58] sm:$0xff]
    %v595 = vld [vmem:[%s3 + $0x60] sm:$0xff]
    %v596 = vld [vmem:[%s3 + $0x68] sm:$0xff]
    %v597 = vld [vmem:[%s3 + $0x70] sm:$0xff]
    %v598 = vld [vmem:[%s3 + $0x78] sm:$0xff]
    %v599 = vld [vmem:[%s4] sm:$0x1]
    %v601 = vlaneseq
    %v602 = vshrl.u32 %v601, 7
    %v603 = vsub.s32 0, %v602
    %v604 = vrot.slane %v599, %v603
    %606 = vmatprep.subr.mxu0 0.0
    %v607 = vand.u32 %v583, 4294901760
    %608 = vmatpush1.msra.mxu0 %v607
    %609 = vmatprep.subr.mxu0 0.0
    %v610 = vand.u32 %v584, 4294901760
    %611 = vmatpush1.msra.mxu0 %v610
    %612 = vmatprep.subr.mxu0 0.0
    %v613 = vand.u32 %v585, 4294901760
    %614 = vmatpush1.msra.mxu0 %v613
    %615 = vmatprep.subr.mxu0 0.0
    %v616 = vand.u32 %v586, 4294901760
    %617 = vmatpush1.msra.mxu0 %v616
    %618 = vmatprep.subr.mxu0 0.0
    %v619 = vand.u32 %v587, 4294901760
    %620 = vmatpush1.msra.mxu0 %v619
    %621 = vmatprep.subr.mxu0 0.0
    %v622 = vand.u32 %v588, 4294901760
    %623 = vmatpush1.msra.mxu0 %v622
    %624 = vmatprep.subr.mxu0 0.0
    %v625 = vand.u32 %v589, 4294901760
    %626 = vmatpush1.msra.mxu0 %v625
    %627 = vmatprep.subr.mxu0 0.0
    %v628 = vand.u32 %v590, 4294901760
    %629 = vmatpush1.msra.mxu0 %v628
    %630 = vmatprep.subr.mxu0 0.0
    %v631 = vand.u32 %v591, 4294901760
    %632 = vmatpush1.msra.mxu0 %v631
    %633 = vmatprep.subr.mxu0 0.0
    %v634 = vand.u32 %v592, 4294901760
    %635 = vmatpush1.msra.mxu0 %v634
    %636 = vmatprep.subr.mxu0 0.0
    %v637 = vand.u32 %v593, 4294901760
    %638 = vmatpush1.msra.mxu0 %v637
    %639 = vmatprep.subr.mxu0 0.0
    %v640 = vand.u32 %v594, 4294901760
    %641 = vmatpush1.msra.mxu0 %v640
    %642 = vmatprep.subr.mxu0 0.0
    %v643 = vand.u32 %v595, 4294901760
    %644 = vmatpush1.msra.mxu0 %v643
    %645 = vmatprep.subr.mxu0 0.0
    %v646 = vand.u32 %v596, 4294901760
    %647 = vmatpush1.msra.mxu0 %v646
    %648 = vmatprep.subr.mxu0 0.0
    %v649 = vand.u32 %v597, 4294901760
    %650 = vmatpush1.msra.mxu0 %v649
    %651 = vmatprep.subr.mxu0 0.0
    %v652 = vand.u32 %v598, 4294901760
    %653 = vmatpush1.msra.mxu0 %v652
    %654 = vmatprep.subr.mxu0 0.0
    %655 = vmatpush1.msra.mxu0 0.0
    %656 = vmatprep.subr.mxu0 0.0
    %657 = vmatpush1.msra.mxu0 0.0
    %658 = vmatprep.subr.mxu0 0.0
    %659 = vmatpush1.msra.mxu0 0.0
    %660 = vmatprep.subr.mxu0 0.0
    %661 = vmatpush1.msra.mxu0 0.0
    %662 = vmatprep.subr.mxu0 0.0
    %663 = vmatpush1.msra.mxu0 0.0
    %664 = vmatprep.subr.mxu0 0.0
    %665 = vmatpush1.msra.mxu0 0.0
    %666 = vmatprep.subr.mxu0 0.0
    %667 = vmatpush1.msra.mxu0 0.0
    %668 = vmatprep.subr.mxu0 0.0
    %669 = vmatpush1.msra.mxu0 0.0
    %670 = vmatprep.subr.mxu0 0.0
    %671 = vmatpush1.msra.mxu0 0.0
    %672 = vmatprep.subr.mxu0 0.0
    %673 = vmatpush1.msra.mxu0 0.0
    %674 = vmatprep.subr.mxu0 0.0
    %675 = vmatpush1.msra.mxu0 0.0
    %676 = vmatprep.subr.mxu0 0.0
    %677 = vmatpush1.msra.mxu0 0.0
    %678 = vmatprep.subr.mxu0 0.0
    %679 = vmatpush1.msra.mxu0 0.0
    %680 = vmatprep.subr.mxu0 0.0
    %681 = vmatpush1.msra.mxu0 0.0
    %682 = vmatprep.subr.mxu0 0.0
    %683 = vmatpush1.msra.mxu0 0.0
    %684 = vmatprep.subr.mxu0 0.0
    %685 = vmatpush1.msra.mxu0 0.0
    %686 = vmatprep.mubr.f32.mxu0 0.0
    %v687 = vand.u32 %v581, 4294901760
    %v688 = vsub.f32 %v581, %v687
    %v689 = vand.u32 %v688, 4294901760
    %v690 = vsub.f32 %v688, %v689
    %v691 = vand.u32 %v690, 4294901760
    %692 = vmatmul.mubr.f32.gmra.mrb[0].mxu0 %v691
    %v693 = vpop.f32.mrb[0].mxu0
    %v694 = vadd.f32 %v604, %v693
    %v695 = vpop.f32.mrb[0].mxu0
    %696 = vmatprep.mubr.f32.mxu0 0.0
    %v697 = vand.u32 %v582, 4294901760
    %v698 = vsub.f32 %v582, %v697
    %v699 = vand.u32 %v698, 4294901760
    %v700 = vsub.f32 %v698, %v699
    %v701 = vand.u32 %v700, 4294901760
    %702 = vmatmul.mubr.f32.gmra.mrb[0].mxu0 %v701
    %v703 = vpop.f32.mrb[0].mxu0
    %v704 = vadd.f32 %v604, %v703
    %v705 = vpop.f32.mrb[0].mxu0
    %706 = vdwg.mxu0
    %707 = vmatprep.subr.mxu0 0.0
    %v708 = vand.u32 %v583, 4294901760
    %v709 = vsub.f32 %v583, %v708
    %v710 = vand.u32 %v709, 4294901760
    %v711 = vsub.f32 %v709, %v710
    %v712 = vand.u32 %v711, 4294901760
    %713 = vmatpush1.msra.mxu0 %v712
    %714 = vmatprep.subr.mxu0 0.0
    %v715 = vand.u32 %v584, 4294901760
    %v716 = vsub.f32 %v584, %v715
    %v717 = vand.u32 %v716, 4294901760
    %v718 = vsub.f32 %v716, %v717
    %v719 = vand.u32 %v718, 4294901760
    %720 = vmatpush1.msra.mxu0 %v719
    %721 = vmatprep.subr.mxu0 0.0
    %v722 = vand.u32 %v585, 4294901760
    %v723 = vsub.f32 %v585, %v722
    %v724 = vand.u32 %v723, 4294901760
    %v725 = vsub.f32 %v723, %v724
    %v726 = vand.u32 %v725, 4294901760
    %727 = vmatpush1.msra.mxu0 %v726
    %728 = vmatprep.subr.mxu0 0.0
    %v729 = vand.u32 %v586, 4294901760
    %v730 = vsub.f32 %v586, %v729
    %v731 = vand.u32 %v730, 4294901760
    %v732 = vsub.f32 %v730, %v731
    %v733 = vand.u32 %v732, 4294901760
    %734 = vmatpush1.msra.mxu0 %v733
    %735 = vmatprep.subr.mxu0 0.0
    %v736 = vand.u32 %v587, 4294901760
    %v737 = vsub.f32 %v587, %v736
    %v738 = vand.u32 %v737, 4294901760
    %v739 = vsub.f32 %v737, %v738
    %v740 = vand.u32 %v739, 4294901760
    %741 = vmatpush1.msra.mxu0 %v740
    %742 = vmatprep.subr.mxu0 0.0
    %v743 = vand.u32 %v588, 4294901760
    %v744 = vsub.f32 %v588, %v743
    %v745 = vand.u32 %v744, 4294901760
    %v746 = vsub.f32 %v744, %v745
    %v747 = vand.u32 %v746, 4294901760
    %748 = vmatpush1.msra.mxu0 %v747
    %749 = vmatprep.subr.mxu0 0.0
    %v750 = vand.u32 %v589, 4294901760
    %v751 = vsub.f32 %v589, %v750
    %v752 = vand.u32 %v751, 4294901760
    %v753 = vsub.f32 %v751, %v752
    %v754 = vand.u32 %v753, 4294901760
    %755 = vmatpush1.msra.mxu0 %v754
    %756 = vmatprep.subr.mxu0 0.0
    %v757 = vand.u32 %v590, 4294901760
    %v758 = vsub.f32 %v590, %v757
    %v759 = vand.u32 %v758, 4294901760
    %v760 = vsub.f32 %v758, %v759
    %v761 = vand.u32 %v760, 4294901760
    %762 = vmatpush1.msra.mxu0 %v761
    %763 = vmatprep.subr.mxu0 0.0
    %v764 = vand.u32 %v591, 4294901760
    %v765 = vsub.f32 %v591, %v764
    %v766 = vand.u32 %v765, 4294901760
    %v767 = vsub.f32 %v765, %v766
    %v768 = vand.u32 %v767, 4294901760
    %769 = vmatpush1.msra.mxu0 %v768
    %770 = vmatprep.subr.mxu0 0.0
    %v771 = vand.u32 %v592, 4294901760
    %v772 = vsub.f32 %v592, %v771
    %v773 = vand.u32 %v772, 4294901760
    %v774 = vsub.f32 %v772, %v773
    %v775 = vand.u32 %v774, 4294901760
    %776 = vmatpush1.msra.mxu0 %v775
    %777 = vmatprep.subr.mxu0 0.0
    %v778 = vand.u32 %v593, 4294901760
    %v779 = vsub.f32 %v593, %v778
    %v780 = vand.u32 %v779, 4294901760
    %v781 = vsub.f32 %v779, %v780
    %v782 = vand.u32 %v781, 4294901760
    %783 = vmatpush1.msra.mxu0 %v782
    %784 = vmatprep.subr.mxu0 0.0
    %v785 = vand.u32 %v594, 4294901760
    %v786 = vsub.f32 %v594, %v785
    %v787 = vand.u32 %v786, 4294901760
    %v788 = vsub.f32 %v786, %v787
    %v789 = vand.u32 %v788, 4294901760
    %790 = vmatpush1.msra.mxu0 %v789
    %791 = vmatprep.subr.mxu0 0.0
    %v792 = vand.u32 %v595, 4294901760
    %v793 = vsub.f32 %v595, %v792
    %v794 = vand.u32 %v793, 4294901760
    %v795 = vsub.f32 %v793, %v794
    %v796 = vand.u32 %v795, 4294901760
    %797 = vmatpush1.msra.mxu0 %v796
    %798 = vmatprep.subr.mxu0 0.0
    %v799 = vand.u32 %v596, 4294901760
    %v800 = vsub.f32 %v596, %v799
    %v801 = vand.u32 %v800, 4294901760
    %v802 = vsub.f32 %v800, %v801
    %v803 = vand.u32 %v802, 4294901760
    %804 = vmatpush1.msra.mxu0 %v803
    %805 = vmatprep.subr.mxu0 0.0
    %v806 = vand.u32 %v597, 4294901760
    %v807 = vsub.f32 %v597, %v806
    %v808 = vand.u32 %v807, 4294901760
    %v809 = vsub.f32 %v807, %v808
    %v810 = vand.u32 %v809, 4294901760
    %811 = vmatpush1.msra.mxu0 %v810
    %812 = vmatprep.subr.mxu0 0.0
    %v813 = vand.u32 %v598, 4294901760
    %v814 = vsub.f32 %v598, %v813
    %v815 = vand.u32 %v814, 4294901760
    %v816 = vsub.f32 %v814, %v815
    %v817 = vand.u32 %v816, 4294901760
    %818 = vmatpush1.msra.mxu0 %v817
    %819 = vmatprep.subr.mxu0 0.0
    %820 = vmatpush1.msra.mxu0 0.0
    %821 = vmatprep.subr.mxu0 0.0
    %822 = vmatpush1.msra.mxu0 0.0
    %823 = vmatprep.subr.mxu0 0.0
    %824 = vmatpush1.msra.mxu0 0.0
    %825 = vmatprep.subr.mxu0 0.0
    %826 = vmatpush1.msra.mxu0 0.0
    %827 = vmatprep.subr.mxu0 0.0
    %828 = vmatpush1.msra.mxu0 0.0
    %829 = vmatprep.subr.mxu0 0.0
    %830 = vmatpush1.msra.mxu0 0.0
    %831 = vmatprep.subr.mxu0 0.0
    %832 = vmatpush1.msra.mxu0 0.0
    %833 = vmatprep.subr.mxu0 0.0
    %834 = vmatpush1.msra.mxu0 0.0
    %835 = vmatprep.subr.mxu0 0.0
    %836 = vmatpush1.msra.mxu0 0.0
    %837 = vmatprep.subr.mxu0 0.0
    %838 = vmatpush1.msra.mxu0 0.0
    %839 = vmatprep.subr.mxu0 0.0
    %840 = vmatpush1.msra.mxu0 0.0
    %841 = vmatprep.subr.mxu0 0.0
    %842 = vmatpush1.msra.mxu0 0.0
    %843 = vmatprep.subr.mxu0 0.0
    %844 = vmatpush1.msra.mxu0 0.0
    %845 = vmatprep.subr.mxu0 0.0
    %846 = vmatpush1.msra.mxu0 0.0
    %847 = vmatprep.subr.mxu0 0.0
    %848 = vmatpush1.msra.mxu0 0.0
    %849 = vmatprep.subr.mxu0 0.0
    %850 = vmatpush1.msra.mxu0 0.0
    %851 = vmatprep.mubr.f32.mxu0 0.0
    %v852 = vand.u32 %v581, 4294901760
    %853 = vmatmul.mubr.f32.gmra.mrb[0].mxu0 %v852
    %v854 = vpop.f32.mrb[0].mxu0
    %v855 = vadd.f32 %v694, %v854
    %v856 = vpop.f32.mrb[0].mxu0
    %857 = vmatprep.mubr.f32.mxu0 0.0
    %v858 = vand.u32 %v582, 4294901760
    %859 = vmatmul.mubr.f32.gmra.mrb[0].mxu0 %v858
    %v860 = vpop.f32.mrb[0].mxu0
    %v861 = vadd.f32 %v704, %v860
    %v862 = vpop.f32.mrb[0].mxu0
    %863 = vdwg.mxu0
    %864 = vmatprep.subr.mxu0 0.0
    %v865 = vand.u32 %v583, 4294901760
    %v866 = vsub.f32 %v583, %v865
    %867 = vmatpush1.msra.mxu0 %v866
    %868 = vmatprep.subr.mxu0 0.0
    %v869 = vand.u32 %v584, 4294901760
    %v870 = vsub.f32 %v584, %v869
    %871 = vmatpush1.msra.mxu0 %v870
    %872 = vmatprep.subr.mxu0 0.0
    %v873 = vand.u32 %v585, 4294901760
    %v874 = vsub.f32 %v585, %v873
    %875 = vmatpush1.msra.mxu0 %v874
    %876 = vmatprep.subr.mxu0 0.0
    %v877 = vand.u32 %v586, 4294901760
    %v878 = vsub.f32 %v586, %v877
    %879 = vmatpush1.msra.mxu0 %v878
    %880 = vmatprep.subr.mxu0 0.0
    %v881 = vand.u32 %v587, 4294901760
    %v882 = vsub.f32 %v587, %v881
    %883 = vmatpush1.msra.mxu0 %v882
    %884 = vmatprep.subr.mxu0 0.0
    %v885 = vand.u32 %v588, 4294901760
    %v886 = vsub.f32 %v588, %v885
    %887 = vmatpush1.msra.mxu0 %v886
    %888 = vmatprep.subr.mxu0 0.0
    %v889 = vand.u32 %v589, 4294901760
    %v890 = vsub.f32 %v589, %v889
    %891 = vmatpush1.msra.mxu0 %v890
    %892 = vmatprep.subr.mxu0 0.0
    %v893 = vand.u32 %v590, 4294901760
    %v894 = vsub.f32 %v590, %v893
    %895 = vmatpush1.msra.mxu0 %v894
    %896 = vmatprep.subr.mxu0 0.0
    %v897 = vand.u32 %v591, 4294901760
    %v898 = vsub.f32 %v591, %v897
    %899 = vmatpush1.msra.mxu0 %v898
    %900 = vmatprep.subr.mxu0 0.0
    %v901 = vand.u32 %v592, 4294901760
    %v902 = vsub.f32 %v592, %v901
    %903 = vmatpush1.msra.mxu0 %v902
    %904 = vmatprep.subr.mxu0 0.0
    %v905 = vand.u32 %v593, 4294901760
    %v906 = vsub.f32 %v593, %v905
    %907 = vmatpush1.msra.mxu0 %v906
    %908 = vmatprep.subr.mxu0 0.0
    %v909 = vand.u32 %v594, 4294901760
    %v910 = vsub.f32 %v594, %v909
    %911 = vmatpush1.msra.mxu0 %v910
    %912 = vmatprep.subr.mxu0 0.0
    %v913 = vand.u32 %v595, 4294901760
    %v914 = vsub.f32 %v595, %v913
    %915 = vmatpush1.msra.mxu0 %v914
    %916 = vmatprep.subr.mxu0 0.0
    %v917 = vand.u32 %v596, 4294901760
    %v918 = vsub.f32 %v596, %v917
    %919 = vmatpush1.msra.mxu0 %v918
    %920 = vmatprep.subr.mxu0 0.0
    %v921 = vand.u32 %v597, 4294901760
    %v922 = vsub.f32 %v597, %v921
    %923 = vmatpush1.msra.mxu0 %v922
    %924 = vmatprep.subr.mxu0 0.0
    %v925 = vand.u32 %v598, 4294901760
    %v926 = vsub.f32 %v598, %v925
    %927 = vmatpush1.msra.mxu0 %v926
    %928 = vmatprep.subr.mxu0 0.0
    %929 = vmatpush1.msra.mxu0 0.0
    %930 = vmatprep.subr.mxu0 0.0
    %931 = vmatpush1.msra.mxu0 0.0
    %932 = vmatprep.subr.mxu0 0.0
    %933 = vmatpush1.msra.mxu0 0.0
    %934 = vmatprep.subr.mxu0 0.0
    %935 = vmatpush1.msra.mxu0 0.0
    %936 = vmatprep.subr.mxu0 0.0
    %937 = vmatpush1.msra.mxu0 0.0
    %938 = vmatprep.subr.mxu0 0.0
    %939 = vmatpush1.msra.mxu0 0.0
    %940 = vmatprep.subr.mxu0 0.0
    %941 = vmatpush1.msra.mxu0 0.0
    %942 = vmatprep.subr.mxu0 0.0
    %943 = vmatpush1.msra.mxu0 0.0
    %944 = vmatprep.subr.mxu0 0.0
    %945 = vmatpush1.msra.mxu0 0.0
    %946 = vmatprep.subr.mxu0 0.0
    %947 = vmatpush1.msra.mxu0 0.0
    %948 = vmatprep.subr.mxu0 0.0
    %949 = vmatpush1.msra.mxu0 0.0
    %950 = vmatprep.subr.mxu0 0.0
    %951 = vmatpush1.msra.mxu0 0.0
    %952 = vmatprep.subr.mxu0 0.0
    %953 = vmatpush1.msra.mxu0 0.0
    %954 = vmatprep.subr.mxu0 0.0
    %955 = vmatpush1.msra.mxu0 0.0
    %956 = vmatprep.subr.mxu0 0.0
    %957 = vmatpush1.msra.mxu0 0.0
    %958 = vmatprep.subr.mxu0 0.0
    %959 = vmatpush1.msra.mxu0 0.0
    %960 = vmatprep.mubr.f32.mxu0 0.0
    %v961 = vand.u32 %v581, 4294901760
    %v962 = vsub.f32 %v581, %v961
    %963 = vmatmul.mubr.f32.gmra.mrb[0].mxu0 %v962
    %v964 = vpop.f32.mrb[0].mxu0
    %v965 = vadd.f32 %v855, %v964
    %v966 = vpop.f32.mrb[0].mxu0
    %967 = vmatprep.mubr.f32.mxu0 0.0
    %v968 = vand.u32 %v582, 4294901760
    %v969 = vsub.f32 %v582, %v968
    %970 = vmatmul.mubr.f32.gmra.mrb[0].mxu0 %v969
    %v971 = vpop.f32.mrb[0].mxu0
    %v972 = vadd.f32 %v861, %v971
    %v973 = vpop.f32.mrb[0].mxu0
    %974 = vdwg.mxu0
    %975 = vmatprep.subr.mxu0 0.0
    %v976 = vand.u32 %v583, 4294901760
    %977 = vmatpush1.msra.mxu0 %v976
    %978 = vmatprep.subr.mxu0 0.0
    %v979 = vand.u32 %v584, 4294901760
    %980 = vmatpush1.msra.mxu0 %v979
    %981 = vmatprep.subr.mxu0 0.0
    %v982 = vand.u32 %v585, 4294901760
    %983 = vmatpush1.msra.mxu0 %v982
    %984 = vmatprep.subr.mxu0 0.0
    %v985 = vand.u32 %v586, 4294901760
    %986 = vmatpush1.msra.mxu0 %v985
    %987 = vmatprep.subr.mxu0 0.0
    %v988 = vand.u32 %v587, 4294901760
    %989 = vmatpush1.msra.mxu0 %v988
    %990 = vmatprep.subr.mxu0 0.0
    %v991 = vand.u32 %v588, 4294901760
    %992 = vmatpush1.msra.mxu0 %v991
    %993 = vmatprep.subr.mxu0 0.0
    %v994 = vand.u32 %v589, 4294901760
    %995 = vmatpush1.msra.mxu0 %v994
    %996 = vmatprep.subr.mxu0 0.0
    %v997 = vand.u32 %v590, 4294901760
    %998 = vmatpush1.msra.mxu0 %v997
    %999 = vmatprep.subr.mxu0 0.0
    %v1000 = vand.u32 %v591, 4294901760
    %1001 = vmatpush1.msra.mxu0 %v1000
    %1002 = vmatprep.subr.mxu0 0.0
    %v1003 = vand.u32 %v592, 4294901760
    %1004 = vmatpush1.msra.mxu0 %v1003
    %1005 = vmatprep.subr.mxu0 0.0
    %v1006 = vand.u32 %v593, 4294901760
    %1007 = vmatpush1.msra.mxu0 %v1006
    %1008 = vmatprep.subr.mxu0 0.0
    %v1009 = vand.u32 %v594, 4294901760
    %1010 = vmatpush1.msra.mxu0 %v1009
    %1011 = vmatprep.subr.mxu0 0.0
    %v1012 = vand.u32 %v595, 4294901760
    %1013 = vmatpush1.msra.mxu0 %v1012
    %1014 = vmatprep.subr.mxu0 0.0
    %v1015 = vand.u32 %v596, 4294901760
    %1016 = vmatpush1.msra.mxu0 %v1015
    %1017 = vmatprep.subr.mxu0 0.0
    %v1018 = vand.u32 %v597, 4294901760
    %1019 = vmatpush1.msra.mxu0 %v1018
    %1020 = vmatprep.subr.mxu0 0.0
    %v1021 = vand.u32 %v598, 4294901760
    %1022 = vmatpush1.msra.mxu0 %v1021
    %1023 = vmatprep.subr.mxu0 0.0
    %1024 = vmatpush1.msra.mxu0 0.0
    %1025 = vmatprep.subr.mxu0 0.0
    %1026 = vmatpush1.msra.mxu0 0.0
    %1027 = vmatprep.subr.mxu0 0.0
    %1028 = vmatpush1.msra.mxu0 0.0
    %1029 = vmatprep.subr.mxu0 0.0
    %1030 = vmatpush1.msra.mxu0 0.0
    %1031 = vmatprep.subr.mxu0 0.0
    %1032 = vmatpush1.msra.mxu0 0.0
    %1033 = vmatprep.subr.mxu0 0.0
    %1034 = vmatpush1.msra.mxu0 0.0
    %1035 = vmatprep.subr.mxu0 0.0
    %1036 = vmatpush1.msra.mxu0 0.0
    %1037 = vmatprep.subr.mxu0 0.0
    %1038 = vmatpush1.msra.mxu0 0.0
    %1039 = vmatprep.subr.mxu0 0.0
    %1040 = vmatpush1.msra.mxu0 0.0
    %1041 = vmatprep.subr.mxu0 0.0
    %1042 = vmatpush1.msra.mxu0 0.0
    %1043 = vmatprep.subr.mxu0 0.0
    %1044 = vmatpush1.msra.mxu0 0.0
    %1045 = vmatprep.subr.mxu0 0.0
    %1046 = vmatpush1.msra.mxu0 0.0
    %1047 = vmatprep.subr.mxu0 0.0
    %1048 = vmatpush1.msra.mxu0 0.0
    %1049 = vmatprep.subr.mxu0 0.0
    %1050 = vmatpush1.msra.mxu0 0.0
    %1051 = vmatprep.subr.mxu0 0.0
    %1052 = vmatpush1.msra.mxu0 0.0
    %1053 = vmatprep.subr.mxu0 0.0
    %1054 = vmatpush1.msra.mxu0 0.0
    %1055 = vmatprep.mubr.f32.mxu0 0.0
    %v1056 = vand.u32 %v581, 4294901760
    %v1057 = vsub.f32 %v581, %v1056
    %v1058 = vand.u32 %v1057, 4294901760
    %1059 = vmatmul.mubr.f32.gmra.mrb[0].mxu0 %v1058
    %v1060 = vpop.f32.mrb[0].mxu0
    %v1061 = vadd.f32 %v965, %v1060
    %v1062 = vpop.f32.mrb[0].mxu0
    %1063 = vmatprep.mubr.f32.mxu0 0.0
    %v1064 = vand.u32 %v582, 4294901760
    %v1065 = vsub.f32 %v582, %v1064
    %v1066 = vand.u32 %v1065, 4294901760
    %1067 = vmatmul.mubr.f32.gmra.mrb[0].mxu0 %v1066
    %v1068 = vpop.f32.mrb[0].mxu0
    %v1069 = vadd.f32 %v972, %v1068
    %v1070 = vpop.f32.mrb[0].mxu0
    %1071 = vdwg.mxu0
    %1072 = vmatprep.subr.mxu0 0.0
    %v1073 = vand.u32 %v583, 4294901760
    %v1074 = vsub.f32 %v583, %v1073
    %v1075 = vand.u32 %v1074, 4294901760
    %1076 = vmatpush1.msra.mxu0 %v1075
    %1077 = vmatprep.subr.mxu0 0.0
    %v1078 = vand.u32 %v584, 4294901760
    %v1079 = vsub.f32 %v584, %v1078
    %v1080 = vand.u32 %v1079, 4294901760
    %1081 = vmatpush1.msra.mxu0 %v1080
    %1082 = vmatprep.subr.mxu0 0.0
    %v1083 = vand.u32 %v585, 4294901760
    %v1084 = vsub.f32 %v585, %v1083
    %v1085 = vand.u32 %v1084, 4294901760
    %1086 = vmatpush1.msra.mxu0 %v1085
    %1087 = vmatprep.subr.mxu0 0.0
    %v1088 = vand.u32 %v586, 4294901760
    %v1089 = vsub.f32 %v586, %v1088
    %v1090 = vand.u32 %v1089, 4294901760
    %1091 = vmatpush1.msra.mxu0 %v1090
    %1092 = vmatprep.subr.mxu0 0.0
    %v1093 = vand.u32 %v587, 4294901760
    %v1094 = vsub.f32 %v587, %v1093
    %v1095 = vand.u32 %v1094, 4294901760
    %1096 = vmatpush1.msra.mxu0 %v1095
    %1097 = vmatprep.subr.mxu0 0.0
    %v1098 = vand.u32 %v588, 4294901760
    %v1099 = vsub.f32 %v588, %v1098
    %v1100 = vand.u32 %v1099, 4294901760
    %1101 = vmatpush1.msra.mxu0 %v1100
    %1102 = vmatprep.subr.mxu0 0.0
    %v1103 = vand.u32 %v589, 4294901760
    %v1104 = vsub.f32 %v589, %v1103
    %v1105 = vand.u32 %v1104, 4294901760
    %1106 = vmatpush1.msra.mxu0 %v1105
    %1107 = vmatprep.subr.mxu0 0.0
    %v1108 = vand.u32 %v590, 4294901760
    %v1109 = vsub.f32 %v590, %v1108
    %v1110 = vand.u32 %v1109, 4294901760
    %1111 = vmatpush1.msra.mxu0 %v1110
    %1112 = vmatprep.subr.mxu0 0.0
    %v1113 = vand.u32 %v591, 4294901760
    %v1114 = vsub.f32 %v591, %v1113
    %v1115 = vand.u32 %v1114, 4294901760
    %1116 = vmatpush1.msra.mxu0 %v1115
    %1117 = vmatprep.subr.mxu0 0.0
    %v1118 = vand.u32 %v592, 4294901760
    %v1119 = vsub.f32 %v592, %v1118
    %v1120 = vand.u32 %v1119, 4294901760
    %1121 = vmatpush1.msra.mxu0 %v1120
    %1122 = vmatprep.subr.mxu0 0.0
    %v1123 = vand.u32 %v593, 4294901760
    %v1124 = vsub.f32 %v593, %v1123
    %v1125 = vand.u32 %v1124, 4294901760
    %1126 = vmatpush1.msra.mxu0 %v1125
    %1127 = vmatprep.subr.mxu0 0.0
    %v1128 = vand.u32 %v594, 4294901760
    %v1129 = vsub.f32 %v594, %v1128
    %v1130 = vand.u32 %v1129, 4294901760
    %1131 = vmatpush1.msra.mxu0 %v1130
    %1132 = vmatprep.subr.mxu0 0.0
    %v1133 = vand.u32 %v595, 4294901760
    %v1134 = vsub.f32 %v595, %v1133
    %v1135 = vand.u32 %v1134, 4294901760
    %1136 = vmatpush1.msra.mxu0 %v1135
    %1137 = vmatprep.subr.mxu0 0.0
    %v1138 = vand.u32 %v596, 4294901760
    %v1139 = vsub.f32 %v596, %v1138
    %v1140 = vand.u32 %v1139, 4294901760
    %1141 = vmatpush1.msra.mxu0 %v1140
    %1142 = vmatprep.subr.mxu0 0.0
    %v1143 = vand.u32 %v597, 4294901760
    %v1144 = vsub.f32 %v597, %v1143
    %v1145 = vand.u32 %v1144, 4294901760
    %1146 = vmatpush1.msra.mxu0 %v1145
    %1147 = vmatprep.subr.mxu0 0.0
    %v1148 = vand.u32 %v598, 4294901760
    %v1149 = vsub.f32 %v598, %v1148
    %v1150 = vand.u32 %v1149, 4294901760
    %1151 = vmatpush1.msra.mxu0 %v1150
    %1152 = vmatprep.subr.mxu0 0.0
    %1153 = vmatpush1.msra.mxu0 0.0
    %1154 = vmatprep.subr.mxu0 0.0
    %1155 = vmatpush1.msra.mxu0 0.0
    %1156 = vmatprep.subr.mxu0 0.0
    %1157 = vmatpush1.msra.mxu0 0.0
    %1158 = vmatprep.subr.mxu0 0.0
    %1159 = vmatpush1.msra.mxu0 0.0
    %1160 = vmatprep.subr.mxu0 0.0
    %1161 = vmatpush1.msra.mxu0 0.0
    %1162 = vmatprep.subr.mxu0 0.0
    %1163 = vmatpush1.msra.mxu0 0.0
    %1164 = vmatprep.subr.mxu0 0.0
    %1165 = vmatpush1.msra.mxu0 0.0
    %1166 = vmatprep.subr.mxu0 0.0
    %1167 = vmatpush1.msra.mxu0 0.0
    %1168 = vmatprep.subr.mxu0 0.0
    %1169 = vmatpush1.msra.mxu0 0.0
    %1170 = vmatprep.subr.mxu0 0.0
    %1171 = vmatpush1.msra.mxu0 0.0
    %1172 = vmatprep.subr.mxu0 0.0
    %1173 = vmatpush1.msra.mxu0 0.0
    %1174 = vmatprep.subr.mxu0 0.0
    %1175 = vmatpush1.msra.mxu0 0.0
    %1176 = vmatprep.subr.mxu0 0.0
    %1177 = vmatpush1.msra.mxu0 0.0
    %1178 = vmatprep.subr.mxu0 0.0
    %1179 = vmatpush1.msra.mxu0 0.0
    %1180 = vmatprep.subr.mxu0 0.0
    %1181 = vmatpush1.msra.mxu0 0.0
    %1182 = vmatprep.subr.mxu0 0.0
    %1183 = vmatpush1.msra.mxu0 0.0
    %1184 = vmatprep.mubr.f32.mxu0 0.0
    %v1185 = vand.u32 %v581, 4294901760
    %1186 = vmatmul.mubr.f32.gmra.mrb[0].mxu0 %v1185
    %v1187 = vpop.f32.mrb[0].mxu0
    %v1188 = vadd.f32 %v1061, %v1187
    %v1189 = vpop.f32.mrb[0].mxu0
    %1190 = vmatprep.mubr.f32.mxu0 0.0
    %v1191 = vand.u32 %v582, 4294901760
    %1192 = vmatmul.mubr.f32.gmra.mrb[0].mxu0 %v1191
    %v1193 = vpop.f32.mrb[0].mxu0
    %v1194 = vadd.f32 %v1069, %v1193
    %v1195 = vpop.f32.mrb[0].mxu0
    %1196 = vdwg.mxu0
    %1197 = vmatprep.subr.mxu0 0.0
    %v1198 = vand.u32 %v583, 4294901760
    %1199 = vmatpush1.msra.mxu0 %v1198
    %1200 = vmatprep.subr.mxu0 0.0
    %v1201 = vand.u32 %v584, 4294901760
    %1202 = vmatpush1.msra.mxu0 %v1201
    %1203 = vmatprep.subr.mxu0 0.0
    %v1204 = vand.u32 %v585, 4294901760
    %1205 = vmatpush1.msra.mxu0 %v1204
    %1206 = vmatprep.subr.mxu0 0.0
    %v1207 = vand.u32 %v586, 4294901760
    %1208 = vmatpush1.msra.mxu0 %v1207
    %1209 = vmatprep.subr.mxu0 0.0
    %v1210 = vand.u32 %v587, 4294901760
    %1211 = vmatpush1.msra.mxu0 %v1210
    %1212 = vmatprep.subr.mxu0 0.0
    %v1213 = vand.u32 %v588, 4294901760
    %1214 = vmatpush1.msra.mxu0 %v1213
    %1215 = vmatprep.subr.mxu0 0.0
    %v1216 = vand.u32 %v589, 4294901760
    %1217 = vmatpush1.msra.mxu0 %v1216
    %1218 = vmatprep.subr.mxu0 0.0
    %v1219 = vand.u32 %v590, 4294901760
    %1220 = vmatpush1.msra.mxu0 %v1219
    %1221 = vmatprep.subr.mxu0 0.0
    %v1222 = vand.u32 %v591, 4294901760
    %1223 = vmatpush1.msra.mxu0 %v1222
    %1224 = vmatprep.subr.mxu0 0.0
    %v1225 = vand.u32 %v592, 4294901760
    %1226 = vmatpush1.msra.mxu0 %v1225
    %1227 = vmatprep.subr.mxu0 0.0
    %v1228 = vand.u32 %v593, 4294901760
    %1229 = vmatpush1.msra.mxu0 %v1228
    %1230 = vmatprep.subr.mxu0 0.0
    %v1231 = vand.u32 %v594, 4294901760
    %1232 = vmatpush1.msra.mxu0 %v1231
    %1233 = vmatprep.subr.mxu0 0.0
    %v1234 = vand.u32 %v595, 4294901760
    %1235 = vmatpush1.msra.mxu0 %v1234
    %1236 = vmatprep.subr.mxu0 0.0
    %v1237 = vand.u32 %v596, 4294901760
    %1238 = vmatpush1.msra.mxu0 %v1237
    %1239 = vmatprep.subr.mxu0 0.0
    %v1240 = vand.u32 %v597, 4294901760
    %1241 = vmatpush1.msra.mxu0 %v1240
    %1242 = vmatprep.subr.mxu0 0.0
    %v1243 = vand.u32 %v598, 4294901760
    %1244 = vmatpush1.msra.mxu0 %v1243
    %1245 = vmatprep.subr.mxu0 0.0
    %1246 = vmatpush1.msra.mxu0 0.0
    %1247 = vmatprep.subr.mxu0 0.0
    %1248 = vmatpush1.msra.mxu0 0.0
    %1249 = vmatprep.subr.mxu0 0.0
    %1250 = vmatpush1.msra.mxu0 0.0
    %1251 = vmatprep.subr.mxu0 0.0
    %1252 = vmatpush1.msra.mxu0 0.0
    %1253 = vmatprep.subr.mxu0 0.0
    %1254 = vmatpush1.msra.mxu0 0.0
    %1255 = vmatprep.subr.mxu0 0.0
    %1256 = vmatpush1.msra.mxu0 0.0
    %1257 = vmatprep.subr.mxu0 0.0
    %1258 = vmatpush1.msra.mxu0 0.0
    %1259 = vmatprep.subr.mxu0 0.0
    %1260 = vmatpush1.msra.mxu0 0.0
    %1261 = vmatprep.subr.mxu0 0.0
    %1262 = vmatpush1.msra.mxu0 0.0
    %1263 = vmatprep.subr.mxu0 0.0
    %1264 = vmatpush1.msra.mxu0 0.0
    %1265 = vmatprep.subr.mxu0 0.0
    %1266 = vmatpush1.msra.mxu0 0.0
    %1267 = vmatprep.subr.mxu0 0.0
    %1268 = vmatpush1.msra.mxu0 0.0
    %1269 = vmatprep.subr.mxu0 0.0
    %1270 = vmatpush1.msra.mxu0 0.0
    %1271 = vmatprep.subr.mxu0 0.0
    %1272 = vmatpush1.msra.mxu0 0.0
    %1273 = vmatprep.subr.mxu0 0.0
    %1274 = vmatpush1.msra.mxu0 0.0
    %1275 = vmatprep.subr.mxu0 0.0
    %1276 = vmatpush1.msra.mxu0 0.0
    %1277 = vmatprep.mubr.f32.mxu0 0.0
    %v1278 = vand.u32 %v581, 4294901760
    %1279 = vmatmul.mubr.f32.gmra.mrb[0].mxu0 %v1278
    %v1280 = vpop.f32.mrb[0].mxu0
    %v1281 = vadd.f32 %v1188, %v1280
    %v1282 = vpop.f32.mrb[0].mxu0
    %1283 = vmatprep.mubr.f32.mxu0 0.0
    %v1284 = vand.u32 %v582, 4294901760
    %1285 = vmatmul.mubr.f32.gmra.mrb[0].mxu0 %v1284
    %v1286 = vpop.f32.mrb[0].mxu0
    %v1287 = vadd.f32 %v1194, %v1286
    %v1288 = vpop.f32.mrb[0].mxu0
    %1289 = vdwg.mxu0
    %1290 = vst.msk [vmem:[#allocation2] sm:$0xff] %vm34, %v1281
    %1291 = vst.msk [vmem:[#allocation2 + $0x8] sm:$0xff] %vm34, %v1287
    // Predicated region
    $region22: #{feedforward_pallas.1} parent=1 // pred_check
      _
    $region23: #{feedforward_pallas.1} parent=1 // pred_check_branch
      %1293 = sbr.rel (0) target = $region25
    $region24: #{feedforward_pallas.1} parent=1 // pred_region
      %s1295 = ssub.s32 256, 256
      %1296 = vsyncadd [#allocation3], %s1295
      %s1297 = sshll.u32 [#allocation2], 4
      %s1298 = int_to_ptr.vmem [resolvable:$true] %s1297
      %1303 = dma.vmem_to_hbm [thread:$0]  %s1298, 256, %s5, [#allocation3], 128, 128, 8
    $region25: #{feedforward_pallas.1} parent=1 // pred_fallthru
      _
    // Predicated region
    $region26: #{feedforward_pallas.1} parent=1 // pred_check
      _
    $region27: #{feedforward_pallas.1} parent=1 // pred_check_branch
      %1305 = sbr.rel (0) target = $region29
    $region28: #{feedforward_pallas.1} parent=1 // pred_region
      %1306 = dma.done [#allocation3], 256
    $region29: #{feedforward_pallas.1} parent=1 // pred_fallthru
      _
    %1307 = vsyncpa [#allocation3], 1

</llo_original>
